<compile_context>
chip_gen: v7x
topology: tpu7x:2x2x1
jax: 0.10.0
libtpu: 0.0.40
codegen_flags: <defaults>
</compile_context>

<pallas_src>
import jax
import jax.numpy as jnp
from jax.experimental import pallas as pl
from jax.experimental.pallas import tpu as pltpu

LEAKY_SLOPE = 0.01  # nn.LeakyReLU default negative_slope


def _round_up(x: int, m: int) -> int:
    return ((x + m - 1) // m) * m


def continuous_input_kernel(x_ref, w_ref, b_ref, o_ref):
    # One MXU matmul (f32 accumulate) + bias add + LeakyReLU per batch tile.
    # Weight/bias tiles are grid-invariant (stay resident in VMEM); x/out tiles
    # are software-pipelined over the batch grid axis.
    x = x_ref[...]                                            # [TB, D]
    w = w_ref[...]                                            # [D,  H]
    y = jnp.dot(x, w, preferred_element_type=jnp.float32)     # [TB, H]
    y = y + b_ref[...]                                        # broadcast [1, H]
    y = jnp.where(y >= 0, y, LEAKY_SLOPE * y)                 # LeakyReLU
    o_ref[...] = y.astype(o_ref.dtype)


def prepare_params(w, b):
    """One-time parameter prep (hoisted out of the per-call forward).

    w: [H, D] float32 (PyTorch nn.Linear weight layout)
    b: [H]    float32
    returns (w_t [D, H], b2 [1, H])
    """
    return jnp.asarray(w).T, jnp.asarray(b).reshape(1, -1)


def _choose_batch_tile(B, D, H, tb_max, itemsize=4, vmem_budget=24 * 1024 * 1024):
    """Balanced batch tile: multiple of 8, <= tb_max, >= 2 grid steps when there
    is enough work (v7x megacore), and double-buffered footprint within VMEM."""
    ntiles = pl.cdiv(B, tb_max)
    if ntiles < 2 and B >= 16:
        ntiles = 2                      # let ("parallel",) split across 2 TCs
    tb = max(8, _round_up(pl.cdiv(B, ntiles), 8))

    def footprint(t):
        # double-buffered x + out tiles, single-buffered resident weight/bias
        return 2 * t * (D + H) * itemsize + (D * H + H) * itemsize

    while tb > 8 and footprint(tb) > vmem_budget:
        tb = max(8, _round_up(tb // 2, 8))
    return tb


def continuous_input_forward(x, w_t, b2, *, tb_max=1024):
    """Forward of ContinuousInput: leaky_relu(x @ w_t + b2).

    x:   [B, D] float32
    w_t: [D, H] float32  (pre-transposed weight, from prepare_params)
    b2:  [1, H] float32
    returns: [B, H] float32
    """
    B, D = x.shape
    H = w_t.shape[1]
    TB = _choose_batch_tile(B, D, H, tb_max)

    return pl.pallas_call(
        continuous_input_kernel,
        out_shape=jax.ShapeDtypeStruct((B, H), x.dtype),
        grid=(pl.cdiv(B, TB),),                               # ragged last tile OK
        in_specs=[
            pl.BlockSpec((TB, D), lambda i: (i, 0)),          # x tile (pipelined)
            pl.BlockSpec((D, H), lambda i: (0, 0)),           # weight (resident)
            pl.BlockSpec((1, H), lambda i: (0, 0)),           # bias (resident)
        ],
        out_specs=pl.BlockSpec((TB, H), lambda i: (i, 0)),
        compiler_params=pltpu.CompilerParams(
            dimension_semantics=("parallel",),                # independent batch tiles
            vmem_limit_bytes=32 * 1024 * 1024,
        ),
    )(x, w_t, b2)


def _reference(x, w, b):
    y = x @ w.T + b
    return jnp.where(y >= 0, y, LEAKY_SLOPE * y)


if __name__ == "__main__":
    key = jax.random.PRNGKey(0)
    batch, obs_dim, hidden = 8, 16, 32

    kx, kw, kb = jax.random.split(key, 3)
    x = jax.random.normal(kx, (batch, obs_dim), dtype=jnp.float32)

    # Deterministic parameter init mimicking nn.Linear's uniform(-1/sqrt(D), 1/sqrt(D)).
    bound = 1.0 / jnp.sqrt(jnp.float32(obs_dim))
    w = jax.random.uniform(kw, (hidden, obs_dim), minval=-bound, maxval=bound,
                           dtype=jnp.float32)                 # PyTorch layout [H, D]
    b = jax.random.uniform(kb, (hidden,), minval=-bound, maxval=bound,
                           dtype=jnp.float32)

    # One-time param prep (transpose + reshape), outside the per-call forward.
    w_t, b2 = prepare_params(w, b)
    w_t, b2 = jax.block_until_ready(w_t), jax.block_until_ready(b2)

    out = continuous_input_forward(x, w_t, b2)
    jax.block_until_ready(out)

    ref = _reference(x, w, b)
    assert out.shape == (batch, hidden)
    assert jnp.allclose(out, ref, atol=1e-5, rtol=1e-5)

    # Secondary check: multi-step batch grid with a ragged last tile (no padding copies).
    big_batch = 600
    xb = jax.random.normal(jax.random.PRNGKey(1), (big_batch, obs_dim),
                           dtype=jnp.float32)
    out_big = continuous_input_forward(xb, w_t, b2)
    jax.block_until_ready(out_big)
    assert out_big.shape == (big_batch, hidden)
    assert jnp.allclose(out_big, _reference(xb, w, b), atol=1e-5, rtol=1e-5)

    # Odd batch size (not a multiple of the tile or of 8) — exercises masking.
    odd_batch = 37
    xo = jax.random.normal(jax.random.PRNGKey(2), (odd_batch, obs_dim),
                           dtype=jnp.float32)
    out_odd = continuous_input_forward(xo, w_t, b2)
    jax.block_until_ready(out_odd)
    assert out_odd.shape == (odd_batch, hidden)
    assert jnp.allclose(out_odd, _reference(xo, w, b), atol=1e-5, rtol=1e-5)

    print("KERNEL_OK")
</pallas_src>

<mosaic_0001>
module attributes {stable_mosaic.version = 11 : i64} {
  func.func @continuous_input_kernel(%arg0: i32, %arg1: memref<8x16xf32, #tpu.memory_space<vmem>>, %arg2: memref<16x32xf32, #tpu.memory_space<vmem>>, %arg3: memref<1x32xf32, #tpu.memory_space<vmem>>, %arg4: memref<8x32xf32, #tpu.memory_space<vmem>>) attributes {dimension_semantics = [#tpu.dimension_semantics<parallel>], iteration_bounds = array<i64: 1>, scalar_prefetch = 0 : i64, scratch_operands = 0 : i64, tpu.core_type = #tpu.core_type<tc>, window_params = [{transform_indices = @transform_0, window_bounds = array<i64: 8, 16>}, {pipeline_mode = #tpu.pipeline_mode<synchronous>, transform_indices = @transform_1, window_bounds = array<i64: 16, 32>}, {pipeline_mode = #tpu.pipeline_mode<synchronous>, transform_indices = @transform_2, window_bounds = array<i64: 1, 32>}, {transform_indices = @transform_3, window_bounds = array<i64: 8, 32>}]} {
    %c0 = arith.constant 0 : index
    %c0_0 = arith.constant 0 : index
    %0 = vector.load %arg1[%c0, %c0_0] : memref<8x16xf32, #tpu.memory_space<vmem>>, vector<8x16xf32>
    %c0_1 = arith.constant 0 : index
    %c0_2 = arith.constant 0 : index
    %1 = vector.load %arg2[%c0_1, %c0_2] : memref<16x32xf32, #tpu.memory_space<vmem>>, vector<16x32xf32>
    %cst = arith.constant dense<0.000000e+00> : vector<8x32xf32>
    %2 = tpu.matmul %0, %1, %cst {dimension_numbers = #tpu.dot_dimension_numbers<[1], [0], [0], [1], [0, 0, 1, 1], [], []>} : vector<8x16xf32>, vector<16x32xf32>, vector<8x32xf32> -> vector<8x32xf32>
    %c0_3 = arith.constant 0 : index
    %c0_4 = arith.constant 0 : index
    %3 = vector.load %arg3[%c0_3, %c0_4] : memref<1x32xf32, #tpu.memory_space<vmem>>, vector<1x32xf32>
    %4 = vector.broadcast %3 : vector<1x32xf32> to vector<8x32xf32>
    %5 = arith.addf %2, %4 : vector<8x32xf32>
    %cst_5 = arith.constant 0.000000e+00 : f32
    %6 = vector.broadcast %cst_5 : f32 to vector<8x32xf32>
    %7 = arith.cmpf oge, %5, %6 : vector<8x32xf32>
    %cst_6 = arith.constant 0.00999999977 : f32
    %8 = vector.broadcast %cst_6 : f32 to vector<8x32xf32>
    %9 = arith.mulf %8, %5 : vector<8x32xf32>
    %10 = arith.select %7, %5, %9 : vector<8x32xi1>, vector<8x32xf32>
    %c0_7 = arith.constant 0 : index
    %c0_8 = arith.constant 0 : index
    %11 = vector.load %arg4[%c0_7, %c0_8] : memref<8x32xf32, #tpu.memory_space<vmem>>, vector<8x32xf32>
    tpu.vector_store %arg4[%c0_7, %c0_8], %10 {strides = array<i32>} : memref<8x32xf32, #tpu.memory_space<vmem>>, vector<8x32xf32>,
    return
  }
  func.func @transform_0(%arg0: i32) -> (i32, i32) {
    %c0_i32 = arith.constant 0 : i32
    %c0_i32_0 = arith.constant 0 : i32
    return %arg0, %c0_i32 : i32, i32
  }
  func.func @transform_1(%arg0: i32) -> (i32, i32) {
    %c0_i32 = arith.constant 0 : i32
    %c0_i32_0 = arith.constant 0 : i32
    %c0_i32_1 = arith.constant 0 : i32
    return %c0_i32, %c0_i32_0 : i32, i32
  }
  func.func @transform_2(%arg0: i32) -> (i32, i32) {
    %c0_i32 = arith.constant 0 : i32
    %c0_i32_0 = arith.constant 0 : i32
    %c0_i32_1 = arith.constant 0 : i32
    return %c0_i32, %c0_i32_0 : i32, i32
  }
  func.func @transform_3(%arg0: i32) -> (i32, i32) {
    %c0_i32 = arith.constant 0 : i32
    %c0_i32_0 = arith.constant 0 : i32
    return %arg0, %c0_i32 : i32, i32
  }
}

</mosaic_0001>

<llo_original>
// kernel: tpu_custom_call.1
$region0: #{tpu_custom_call.1}
  #allocation0 [shape = 'u32[]', space=smem, size = 0x4, offset = 0x4, fixed_abs, tag = 'smem constant byte address 0x4 - core index']
  #allocation1 [shape = 'u32[144,128]{1,0:T(1,128)}', space=vmem, size = 0x12000, scoped, tag = 'internal scratch']
  %s0 = inlined_call_operand.hbm [shape: f32[8,16], index: 0, kind: input, shape index: {}]
  %s1 = inlined_call_operand.hbm [shape: f32[16,32], index: 1, kind: input, shape index: {}]
  %s2 = inlined_call_operand.vmem [shape: f32[1,32], index: 2, kind: input, shape index: {}]
  %s3 = inlined_call_operand.hbm [shape: f32[8,32], index: 3, kind: output, shape index: {}]
  %s4 = sld [smem:[#allocation0]]
  $region30: #{tpu_custom_call.1} parent=0
    _
  %s6 = ssub.s32 1, %s4
  %s7 = scalar_select 0, %s6, %s4
  $region1: #{tpu_custom_call.1} parent=0
    #allocation2 [shape = 'u8[4096]{0}', space=vmem, size = 0x1000, scoped, tag = 'input window, operand 0, single buffered']
    #allocation3 [shape = 's32[1]{0}', space=sflag, size = 0x4, scoped, tag = 'scoped memory for tpu_custom_call.1']
    #allocation4 [shape = 's32[1]{0}', space=sflag, size = 0x4, scoped, tag = 'scoped memory for tpu_custom_call.1']
    #allocation5 [shape = 'u8[8192]{0}', space=vmem, size = 0x2000, scoped, tag = 'input window, operand 1, single buffered']
    #allocation6 [shape = 's32[1]{0}', space=sflag, size = 0x4, scoped, tag = 'scoped memory for tpu_custom_call.1']
    #allocation7 [shape = 'u8[4096]{0}', space=vmem, size = 0x1000, scoped, tag = 'output window, operand 0, single buffered']
    %8 = vsyncpa [#allocation3], 0
    %9 = vsyncpa [#allocation6], 0
    %10 = vsyncpa [#allocation4], 0
    // Predicated region
    $region2: #{tpu_custom_call.1} parent=1 // pred_check
      _
    $region3: #{tpu_custom_call.1} parent=1 // pred_check_branch
      %12 = sbr.rel (0) target = $region5
    $region4: #{tpu_custom_call.1} parent=1 // pred_region
      %s14 = ssub.s32 128, 128
      %15 = vsyncadd [#allocation3], %s14
      %s17 = sshll.u32 [#allocation2], 4
      %s18 = int_to_ptr.vmem [resolvable:$true] %s17
      %20 = dma.hbm_to_vmem [thread:$0]  %s0, 128, %s18, [#allocation3]
    $region5: #{tpu_custom_call.1} parent=1 // pred_fallthru
      _
    // Predicated region
    $region6: #{tpu_custom_call.1} parent=1 // pred_check
      _
    $region7: #{tpu_custom_call.1} parent=1 // pred_check_branch
      %22 = sbr.rel (0) target = $region9
    $region8: #{tpu_custom_call.1} parent=1 // pred_region
      %s24 = ssub.s32 256, 256
      %25 = vsyncadd [#allocation6], %s24
      %s26 = sshll.u32 [#allocation5], 4
      %s27 = int_to_ptr.vmem [resolvable:$true] %s26
      %32 = dma.hbm_to_vmem [thread:$0]  %s1, 256, %s27, [#allocation6], 128, 128, 8
    $region9: #{tpu_custom_call.1} parent=1 // pred_fallthru
      _
    // Predicated region
    $region10: #{tpu_custom_call.1} parent=1 // pred_check
      _
    $region11: #{tpu_custom_call.1} parent=1 // pred_check_branch
      %34 = sbr.rel (0) target = $region13
    $region12: #{tpu_custom_call.1} parent=1 // pred_region
      _
    $region13: #{tpu_custom_call.1} parent=1 // pred_fallthru
      _
    // Predicated region
    $region14: #{tpu_custom_call.1} parent=1 // pred_check
      _
    $region15: #{tpu_custom_call.1} parent=1 // pred_check_branch
      %36 = sbr.rel (0) target = $region17
    $region16: #{tpu_custom_call.1} parent=1 // pred_region
      %37 = dma.done [#allocation3], 128
    $region17: #{tpu_custom_call.1} parent=1 // pred_fallthru
      _
    // Predicated region
    $region18: #{tpu_custom_call.1} parent=1 // pred_check
      _
    $region19: #{tpu_custom_call.1} parent=1 // pred_check_branch
      %39 = sbr.rel (0) target = $region21
    $region20: #{tpu_custom_call.1} parent=1 // pred_region
      %40 = dma.done [#allocation6], 256
    $region21: #{tpu_custom_call.1} parent=1 // pred_fallthru
      _
    %v41 = vld [vmem:[#allocation2] sm:$0xff]
    %v42 = vld [vmem:[#allocation5] sm:$0xff]
    %v43 = vld [vmem:[#allocation5 + $0x8] sm:$0xff]
    %v44 = vld [vmem:[%s2] sm:$0x1]
    %v46 = vlaneseq
    %v47 = vshrl.u32 %v46, 7
    %v48 = vsub.s32 0, %v47
    %v49 = vrot.slane %v44, %v48
    %vm51 = vcmask 130048
    %v53 = vsel %vm51, %v41, 0
    %55 = vmatprep.subr.mxu0 0.0
    %56 = vmatpush1.msra.mxu0 %v42
    %57 = vmatprep.subr.mxu0 0.0
    %58 = vmatpush1.msra.mxu0 %v43
    %59 = vmatprep.subr.mxu0 0.0
    %60 = vmatpush1.msra.mxu0 0.0
    %61 = vmatprep.subr.mxu0 0.0
    %62 = vmatpush1.msra.mxu0 0.0
    %63 = vmatprep.subr.mxu0 0.0
    %64 = vmatpush1.msra.mxu0 0.0
    %65 = vmatprep.subr.mxu0 0.0
    %66 = vmatpush1.msra.mxu0 0.0
    %67 = vmatprep.subr.mxu0 0.0
    %68 = vmatpush1.msra.mxu0 0.0
    %69 = vmatprep.subr.mxu0 0.0
    %70 = vmatpush1.msra.mxu0 0.0
    %71 = vmatprep.subr.mxu0 0.0
    %72 = vmatpush1.msra.mxu0 0.0
    %73 = vmatprep.subr.mxu0 0.0
    %74 = vmatpush1.msra.mxu0 0.0
    %75 = vmatprep.subr.mxu0 0.0
    %76 = vmatpush1.msra.mxu0 0.0
    %77 = vmatprep.subr.mxu0 0.0
    %78 = vmatpush1.msra.mxu0 0.0
    %79 = vmatprep.subr.mxu0 0.0
    %80 = vmatpush1.msra.mxu0 0.0
    %81 = vmatprep.subr.mxu0 0.0
    %82 = vmatpush1.msra.mxu0 0.0
    %83 = vmatprep.subr.mxu0 0.0
    %84 = vmatpush1.msra.mxu0 0.0
    %85 = vmatprep.subr.mxu0 0.0
    %86 = vmatpush1.msra.mxu0 0.0
    %87 = vmatprep.subr.mxu0 0.0
    %88 = vmatpush1.msra.mxu0 0.0
    %89 = vmatprep.subr.mxu0 0.0
    %90 = vmatpush1.msra.mxu0 0.0
    %91 = vmatprep.subr.mxu0 0.0
    %92 = vmatpush1.msra.mxu0 0.0
    %93 = vmatprep.subr.mxu0 0.0
    %94 = vmatpush1.msra.mxu0 0.0
    %95 = vmatprep.subr.mxu0 0.0
    %96 = vmatpush1.msra.mxu0 0.0
    %97 = vmatprep.subr.mxu0 0.0
    %98 = vmatpush1.msra.mxu0 0.0
    %99 = vmatprep.subr.mxu0 0.0
    %100 = vmatpush1.msra.mxu0 0.0
    %101 = vmatprep.subr.mxu0 0.0
    %102 = vmatpush1.msra.mxu0 0.0
    %103 = vmatprep.subr.mxu0 0.0
    %104 = vmatpush1.msra.mxu0 0.0
    %105 = vmatprep.subr.mxu0 0.0
    %106 = vmatpush1.msra.mxu0 0.0
    %107 = vmatprep.subr.mxu0 0.0
    %108 = vmatpush1.msra.mxu0 0.0
    %109 = vmatprep.subr.mxu0 0.0
    %110 = vmatpush1.msra.mxu0 0.0
    %111 = vmatprep.subr.mxu0 0.0
    %112 = vmatpush1.msra.mxu0 0.0
    %113 = vmatprep.subr.mxu0 0.0
    %114 = vmatpush1.msra.mxu0 0.0
    %115 = vmatprep.subr.mxu0 0.0
    %116 = vmatpush1.msra.mxu0 0.0
    %117 = vmatprep.subr.mxu0 0.0
    %118 = vmatpush1.msra.mxu0 0.0
    %119 = vmatprep.mubr.f32.mxu0 0.0
    %120 = vmatmul.mubr.f32.gmra.mrb[0].mxu0 %v53
    %v121 = vpop.f32.mrb[0].mxu0
    %v122 = vadd.f32 %v49, %v121
    %v123 = vpop.f32.mrb[0].mxu0
    %124 = vdwg.mxu0
    %vm125 = vcmp.ge.f32.partialorder %v122, 0.0
    %v126 = vmul.f32 %v122, 0.01
    %v127 = vsel %vm125, %v122, %v126
    %vm128 = vcmask 261120
    %129 = vst.msk [vmem:[#allocation7] sm:$0xff] %vm128, %v127
    // Predicated region
    $region22: #{tpu_custom_call.1} parent=1 // pred_check
      _
    $region23: #{tpu_custom_call.1} parent=1 // pred_check_branch
      %131 = sbr.rel (0) target = $region25
    $region24: #{tpu_custom_call.1} parent=1 // pred_region
      %s133 = ssub.s32 128, 128
      %134 = vsyncadd [#allocation4], %s133
      %s136 = sshll.u32 [#allocation7], 4
      %s137 = int_to_ptr.vmem [resolvable:$true] %s136
      %139 = dma.vmem_to_hbm [thread:$0]  %s137, 128, %s3, [#allocation4]
    $region25: #{tpu_custom_call.1} parent=1 // pred_fallthru
      _
    // Predicated region
    $region26: #{tpu_custom_call.1} parent=1 // pred_check
      _
    $region27: #{tpu_custom_call.1} parent=1 // pred_check_branch
      %141 = sbr.rel (0) target = $region29
    $region28: #{tpu_custom_call.1} parent=1 // pred_region
      %142 = dma.done [#allocation4], 128
    $region29: #{tpu_custom_call.1} parent=1 // pred_fallthru
      _
    %143 = vsyncpa [#allocation3], 1
    %144 = vsyncpa [#allocation6], 1
    %145 = vsyncpa [#allocation4], 1

</llo_original>
